<compile_context>
chip_gen: v6e
topology: v6e:2x2x1
jax: 0.10.0
libtpu: 0.0.40
codegen_flags: <defaults>
</compile_context>

<pallas_src>
import inspect

import jax
import jax.numpy as jnp
from jax.experimental import pallas as pl
from jax.experimental.pallas import tpu as pltpu

_LANE = 128
_SUBLANE = 8
_VMEM_SOFT_BUDGET = 40 * 1024 * 1024      # buffer budget: headroom under v7x's 64 MiB
_VMEM_LIMIT_CAP = 56 * 1024 * 1024        # never request more than this scoped VMEM
_SINGLE_BUFFER_THRESHOLD = 4 * 1024 * 1024  # single-buffer weights above this footprint


def _round_up(x, m):
    return (x + m - 1) // m * m


def _pipeline_mode_supported():
    """Feature-detect BlockSpec(pipeline_mode=pl.Buffered(...)) support."""
    if not hasattr(pl, "Buffered"):
        return False
    try:
        return "pipeline_mode" in inspect.signature(pl.BlockSpec).parameters
    except (TypeError, ValueError):
        return False


_HAS_BUFFERED = _pipeline_mode_supported()


def _resident_spec(shape, single_buffer):
    """Grid-resident block (constant index_map); optionally single-buffered."""
    if single_buffer and _HAS_BUFFERED:
        return pl.BlockSpec(shape, lambda i: (0, 0), pipeline_mode=pl.Buffered(1))
    return pl.BlockSpec(shape, lambda i: (0, 0))


def _vmem_bytes(tile_m, dp, hp, x_isize, w_isize, w_bufs):
    """Rough per-call VMEM requirement for the chosen tiling."""
    act_in = 2 * tile_m * dp * x_isize            # x row tile, double-buffered
    act_out = 2 * tile_m * dp * x_isize           # out row tile, double-buffered
    weights = w_bufs * 2 * dp * hp * w_isize      # W_down + W_up
    biases = 2 * (hp + dp) * 4
    temps = tile_m * hp * 4 + 2 * tile_m * dp * 4  # f32 hidden + body temporaries
    return act_in + act_out + weights + biases + temps


def prepare_source_adaptor_params(w_down, b_down, w_up, b_up, *, mxu_dtype=None):
    """Pad parameters to lane (128) multiples once, outside the per-call path.

    mxu_dtype=jnp.bfloat16 is recommended on v6e/v7x for large dims (bf16-native
    MXU, and it halves weight DMA / VMEM bytes).  Biases stay f32; zero padding
    is mathematically exact for this computation.
    """
    d, h = w_down.shape
    dp, hp = _round_up(d, _LANE), _round_up(h, _LANE)
    wd = jnp.pad(w_down, ((0, dp - d), (0, hp - h)))
    wu = jnp.pad(w_up, ((0, hp - h), (0, dp - d)))
    bd = jnp.pad(jnp.asarray(b_down, jnp.float32).reshape(1, -1), ((0, 0), (0, hp - h)))
    bu = jnp.pad(jnp.asarray(b_up, jnp.float32).reshape(1, -1), ((0, 0), (0, dp - d)))
    if mxu_dtype is not None:
        wd = wd.astype(mxu_dtype)
        wu = wu.astype(mxu_dtype)
    return wd, bd, wu, bu


# ---------------------------------------------------------------------------
# Fused kernel: one row tile of   o = x + relu(x @ Wd + bd) @ Wu + bu
# Everything (both matmuls, bias adds, ReLU, residual) stays in VMEM.
# ---------------------------------------------------------------------------
def _adaptor_kernel(x_ref, wd_ref, bd_ref, wu_ref, bu_ref, o_ref):
    x = x_ref[...]
    mxu_dt = wd_ref.dtype
    x_mx = x if x.dtype == mxu_dt else x.astype(mxu_dt)
    h = jnp.dot(x_mx, wd_ref[...], preferred_element_type=jnp.float32)
    h = jnp.maximum(h + bd_ref[...], 0.0)                     # bias + ReLU in f32
    h_mx = h if h.dtype == mxu_dt else h.astype(mxu_dt)
    y = jnp.dot(h_mx, wu_ref[...], preferred_element_type=jnp.float32) + bu_ref[...]
    o_ref[...] = (x.astype(jnp.float32) + y).astype(o_ref.dtype)   # residual in f32


def source_adaptor_fwd(x, w_down, b_down, w_up, b_up, *, true_hidden=None,
                       tile_m=1024):
    """Fused SourceAdaptor forward.

    x: (..., D).  Parameters are expected lane-padded (see
    prepare_source_adaptor_params); unpadded parameters are padded here as a
    fallback.  `true_hidden` is the unpadded bottleneck dim (cost estimate only).
    """
    orig_shape = x.shape
    d = orig_shape[-1]

    # Fallback: pad / normalize the params if the caller did not pre-pad them.
    if (w_down.shape[0] % _LANE) or (w_down.shape[1] % _LANE) or b_down.ndim != 2:
        if true_hidden is None:
            true_hidden = w_down.shape[1]
        w_down, b_down, w_up, b_up = prepare_source_adaptor_params(
            w_down, b_down, w_up, b_up)
    dp, hp = w_down.shape
    if true_hidden is None:
        true_hidden = hp

    x2 = x.reshape(-1, d)
    m = x2.shape[0]

    # Lane pad the activation only when D is not already a lane multiple.  When
    # D % 128 == 0 the reshaped input buffer is aliased as the output directly.
    if d != dp:
        x2 = jnp.pad(x2, ((0, 0), (0, dp - d)))

    x_isize = jnp.dtype(x2.dtype).itemsize
    w_isize = jnp.dtype(w_down.dtype).itemsize

    # Single-buffer the resident weights only when their footprint matters.
    single_buf_w = _HAS_BUFFERED and (2 * dp * hp * w_isize > _SINGLE_BUFFER_THRESHOLD)
    w_bufs = 1 if single_buf_w else 2

    # Row tile: big by default (per-step overhead amortization), capped to the
    # actual row count and to a VMEM budget that fits v7x's 64 MiB.
    tile_m = min(tile_m, _round_up(m, _SUBLANE))
    while tile_m > 256 and _vmem_bytes(tile_m, dp, hp, x_isize, w_isize, w_bufs) > _VMEM_SOFT_BUDGET:
        tile_m = max(256, _round_up(tile_m // 2, _SUBLANE))
    grid = (pl.cdiv(m, tile_m),)   # ragged last block handled by Pallas masking

    vmem_need = _vmem_bytes(tile_m, dp, hp, x_isize, w_isize, w_bufs)
    vmem_limit = int(min(_VMEM_LIMIT_CAP, max(32 * 1024 * 1024, vmem_need * 5 // 4)))

    # Cost estimate from the TRUE (unpadded) sizes.
    flops = 4 * m * d * true_hidden
    bytes_accessed = (2 * m * d * x_isize                 # read x + write out
                      + 2 * d * true_hidden * w_isize     # both weight matrices
                      + 4 * (d + true_hidden))            # biases

    out = pl.pallas_call(
        _adaptor_kernel,
        out_shape=jax.ShapeDtypeStruct(x2.shape, x2.dtype),
        grid_spec=pltpu.PrefetchScalarGridSpec(
            num_scalar_prefetch=0,
            grid=grid,
            in_specs=[
                pl.BlockSpec((tile_m, dp), lambda i: (i, 0)),      # x row tile
                _resident_spec((dp, hp), single_buf_w),            # W_down
                _resident_spec((1, hp), False),                    # b_down
                _resident_spec((hp, dp), single_buf_w),            # W_up
                _resident_spec((1, dp), False),                    # b_up
            ],
            out_specs=pl.BlockSpec((tile_m, dp), lambda i: (i, 0)),
        ),
        compiler_params=pltpu.CompilerParams(
            dimension_semantics=("parallel",),
            vmem_limit_bytes=vmem_limit),
        cost_estimate=pl.CostEstimate(
            flops=flops, transcendentals=0, bytes_accessed=bytes_accessed),
        input_output_aliases={0: 0},   # residual written back into the x buffer
    )(x2, w_down, b_down, w_up, b_up)

    if d != dp:
        out = out[:, :d]
    return out.reshape(orig_shape)


if __name__ == "__main__":
    key = jax.random.PRNGKey(0)
    B, S, D = 2, 8, 32          # batch, seq, input_dim
    H = D // 2                  # bottleneck dim = input_dim / 2

    k_x, k_wd, k_bd, k_wu, k_bu, k_r = jax.random.split(key, 6)
    x = jax.random.normal(k_x, (B, S, D), jnp.float32)

    # nn.Linear weights stored as (in, out) so the kernel computes x @ W + b,
    # i.e. exactly PyTorch's x @ weight.T + bias.
    bd_bound = 1.0 / (D ** 0.5)
    bu_bound = 1.0 / (H ** 0.5)
    w_down = jax.random.uniform(k_wd, (D, H), jnp.float32, -bd_bound, bd_bound)
    b_down = jax.random.uniform(k_bd, (H,), jnp.float32, -bd_bound, bd_bound)
    w_up = jax.random.uniform(k_wu, (H, D), jnp.float32, -bu_bound, bu_bound)
    b_up = jax.random.uniform(k_bu, (D,), jnp.float32, -bu_bound, bu_bound)

    def reference(xx):
        hid = jnp.maximum(xx @ w_down + b_down, 0.0)
        return xx + (hid @ w_up + b_up)

    fwd = jax.jit(source_adaptor_fwd, static_argnames=("true_hidden", "tile_m"))

    # 1) f32 MXU path: matches the f32 reference to tight tolerance.
    p32 = prepare_source_adaptor_params(w_down, b_down, w_up, b_up)
    out = jax.block_until_ready(fwd(x, *p32, true_hidden=H))
    assert out.shape == x.shape and out.dtype == x.dtype, (out.shape, out.dtype)
    assert jnp.allclose(out, reference(x), atol=1e-5, rtol=1e-5)

    # 2) Ragged row count (m % tile_m != 0): exercises the cdiv grid / masked tail.
    x_rag = jax.random.normal(k_r, (23, D), jnp.float32)
    out_rag = jax.block_until_ready(fwd(x_rag, *p32, true_hidden=H, tile_m=16))
    assert jnp.allclose(out_rag, reference(x_rag), atol=1e-5, rtol=1e-5)

    # 3) bf16 MXU operands (recommended config for v6e/v7x); looser tolerance.
    p16 = prepare_source_adaptor_params(w_down, b_down, w_up, b_up,
                                        mxu_dtype=jnp.bfloat16)
    out16 = jax.block_until_ready(fwd(x, *p16, true_hidden=H))
    assert jnp.allclose(out16, reference(x), atol=5e-2, rtol=5e-2)

    print("KERNEL_OK")
</pallas_src>

<mosaic_0001>
module attributes {stable_mosaic.version = 11 : i64} {
  func.func @_adaptor_kernel(%arg0: i32, %arg1: memref<16x128xf32, #tpu.memory_space<vmem>>, %arg2: memref<128x128xf32, #tpu.memory_space<vmem>>, %arg3: memref<1x128xf32, #tpu.memory_space<vmem>>, %arg4: memref<128x128xf32, #tpu.memory_space<vmem>>, %arg5: memref<1x128xf32, #tpu.memory_space<vmem>>, %arg6: memref<16x128xf32, #tpu.memory_space<vmem>>) attributes {dimension_semantics = [#tpu.dimension_semantics<parallel>], iteration_bounds = array<i64: 1>, scalar_prefetch = 0 : i64, scratch_operands = 0 : i64, tpu.core_type = #tpu.core_type<tc>, window_params = [{transform_indices = @transform_0, window_bounds = array<i64: 16, 128>}, {pipeline_mode = #tpu.pipeline_mode<synchronous>, transform_indices = @transform_1, window_bounds = array<i64: 128, 128>}, {pipeline_mode = #tpu.pipeline_mode<synchronous>, transform_indices = @transform_2, window_bounds = array<i64: 1, 128>}, {pipeline_mode = #tpu.pipeline_mode<synchronous>, transform_indices = @transform_3, window_bounds = array<i64: 128, 128>}, {pipeline_mode = #tpu.pipeline_mode<synchronous>, transform_indices = @transform_4, window_bounds = array<i64: 1, 128>}, {transform_indices = @transform_5, window_bounds = array<i64: 16, 128>}]} {
    %c0 = arith.constant 0 : index
    %c0_0 = arith.constant 0 : index
    %0 = vector.load %arg1[%c0, %c0_0] : memref<16x128xf32, #tpu.memory_space<vmem>>, vector<16x128xf32>
    %c0_1 = arith.constant 0 : index
    %c0_2 = arith.constant 0 : index
    %1 = vector.load %arg2[%c0_1, %c0_2] : memref<128x128xf32, #tpu.memory_space<vmem>>, vector<128x128xf32>
    %cst = arith.constant dense<0.000000e+00> : vector<16x128xf32>
    %2 = tpu.matmul %0, %1, %cst {dimension_numbers = #tpu.dot_dimension_numbers<[1], [0], [0], [1], [0, 0, 1, 1], [], []>} : vector<16x128xf32>, vector<128x128xf32>, vector<16x128xf32> -> vector<16x128xf32>
    %c0_3 = arith.constant 0 : index
    %c0_4 = arith.constant 0 : index
    %3 = vector.load %arg3[%c0_3, %c0_4] : memref<1x128xf32, #tpu.memory_space<vmem>>, vector<1x128xf32>
    %4 = vector.broadcast %3 : vector<1x128xf32> to vector<16x128xf32>
    %5 = arith.addf %2, %4 : vector<16x128xf32>
    %cst_5 = arith.constant 0.000000e+00 : f32
    %6 = vector.broadcast %cst_5 : f32 to vector<16x128xf32>
    %7 = arith.maximumf %5, %6 : vector<16x128xf32>
    %c0_6 = arith.constant 0 : index
    %c0_7 = arith.constant 0 : index
    %8 = vector.load %arg4[%c0_6, %c0_7] : memref<128x128xf32, #tpu.memory_space<vmem>>, vector<128x128xf32>
    %cst_8 = arith.constant dense<0.000000e+00> : vector<16x128xf32>
    %9 = tpu.matmul %7, %8, %cst_8 {dimension_numbers = #tpu.dot_dimension_numbers<[1], [0], [0], [1], [0, 0, 1, 1], [], []>} : vector<16x128xf32>, vector<128x128xf32>, vector<16x128xf32> -> vector<16x128xf32>
    %c0_9 = arith.constant 0 : index
    %c0_10 = arith.constant 0 : index
    %10 = vector.load %arg5[%c0_9, %c0_10] : memref<1x128xf32, #tpu.memory_space<vmem>>, vector<1x128xf32>
    %11 = vector.broadcast %10 : vector<1x128xf32> to vector<16x128xf32>
    %12 = arith.addf %9, %11 : vector<16x128xf32>
    %13 = arith.addf %0, %12 : vector<16x128xf32>
    %c0_11 = arith.constant 0 : index
    %c0_12 = arith.constant 0 : index
    %14 = vector.load %arg6[%c0_11, %c0_12] : memref<16x128xf32, #tpu.memory_space<vmem>>, vector<16x128xf32>
    tpu.vector_store %arg6[%c0_11, %c0_12], %13 {strides = array<i32>} : memref<16x128xf32, #tpu.memory_space<vmem>>, vector<16x128xf32>,
    return
  }
  func.func @transform_0(%arg0: i32) -> (i32, i32) {
    %c0_i32 = arith.constant 0 : i32
    %c0_i32_0 = arith.constant 0 : i32
    return %arg0, %c0_i32 : i32, i32
  }
  func.func @transform_1(%arg0: i32) -> (i32, i32) {
    %c0_i32 = arith.constant 0 : i32
    %c0_i32_0 = arith.constant 0 : i32
    %c0_i32_1 = arith.constant 0 : i32
    return %c0_i32, %c0_i32_0 : i32, i32
  }
  func.func @transform_2(%arg0: i32) -> (i32, i32) {
    %c0_i32 = arith.constant 0 : i32
    %c0_i32_0 = arith.constant 0 : i32
    %c0_i32_1 = arith.constant 0 : i32
    return %c0_i32, %c0_i32_0 : i32, i32
  }
  func.func @transform_3(%arg0: i32) -> (i32, i32) {
    %c0_i32 = arith.constant 0 : i32
    %c0_i32_0 = arith.constant 0 : i32
    %c0_i32_1 = arith.constant 0 : i32
    return %c0_i32, %c0_i32_0 : i32, i32
  }
  func.func @transform_4(%arg0: i32) -> (i32, i32) {
    %c0_i32 = arith.constant 0 : i32
    %c0_i32_0 = arith.constant 0 : i32
    %c0_i32_1 = arith.constant 0 : i32
    return %c0_i32, %c0_i32_0 : i32, i32
  }
  func.func @transform_5(%arg0: i32) -> (i32, i32) {
    %c0_i32 = arith.constant 0 : i32
    %c0_i32_0 = arith.constant 0 : i32
    return %arg0, %c0_i32 : i32, i32
  }
}

</mosaic_0001>

<llo_original>
// kernel: source_adaptor_fwd.1
$region0: #{source_adaptor_fwd.1}
  #allocation0 [shape = 'u32[]', space=smem, size = 0x4, offset = 0x4, fixed_abs, tag = 'smem constant byte address 0x4 - core index']
  #allocation1 [shape = 'u32[144,128]{1,0:T(1,128)}', space=vmem, size = 0x12000, scoped, tag = 'internal scratch']
  %s0 = inlined_call_operand.vmem [shape: f32[16,128], index: 0, kind: input, shape index: {}, may-alias: {0,5}]
  %s1 = inlined_call_operand.hbm [shape: f32[128,128], index: 1, kind: input, shape index: {}]
  %s2 = inlined_call_operand.vmem [shape: f32[1,128], index: 2, kind: input, shape index: {}]
  %s3 = inlined_call_operand.hbm [shape: f32[128,128], index: 3, kind: input, shape index: {}]
  %s4 = inlined_call_operand.vmem [shape: f32[1,128], index: 4, kind: input, shape index: {}]
  %s5 = inlined_call_operand.vmem [shape: f32[16,128], index: 5, kind: output, shape index: {}, may-alias: {0,5}]
  %s6 = sld [smem:[#allocation0]]
  $region38: #{source_adaptor_fwd.1} parent=0
    _
  %s8 = ssub.s32 1, %s6
  %s9 = scalar_select 0, %s8, %s6
  $region1: #{source_adaptor_fwd.1} parent=0
    #allocation2 [shape = 'u8[65536]{0}', space=vmem, size = 0x10000, scoped, tag = 'input window, operand 1, single buffered']
    #allocation3 [shape = 's32[1]{0}', space=sflag, size = 0x4, scoped, tag = 'scoped memory for source_adaptor_fwd.1']
    #allocation4 [shape = 'u8[65536]{0}', space=vmem, size = 0x10000, scoped, tag = 'input window, operand 3, single buffered']
    #allocation5 [shape = 's32[1]{0}', space=sflag, size = 0x4, scoped, tag = 'scoped memory for source_adaptor_fwd.1']
    %10 = vsyncpa [#allocation3], 0
    %11 = vsyncpa [#allocation5], 0
    // Predicated region
    $region2: #{source_adaptor_fwd.1} parent=1 // pred_check
      _
    $region3: #{source_adaptor_fwd.1} parent=1 // pred_check_branch
      %13 = sbr.rel (0) target = $region5
    $region4: #{source_adaptor_fwd.1} parent=1 // pred_region
      _
    $region5: #{source_adaptor_fwd.1} parent=1 // pred_fallthru
      _
    // Predicated region
    $region6: #{source_adaptor_fwd.1} parent=1 // pred_check
      _
    $region7: #{source_adaptor_fwd.1} parent=1 // pred_check_branch
      %15 = sbr.rel (0) target = $region9
    $region8: #{source_adaptor_fwd.1} parent=1 // pred_region
      %s17 = ssub.s32 2048, 2048
      %18 = vsyncadd [#allocation3], %s17
      %s19 = sshll.u32 [#allocation2], 4
      %s20 = int_to_ptr.vmem [resolvable:$true] %s19
      %25 = dma.hbm_to_vmem [thread:$0]  %s1, 2048, %s20, [#allocation3], 128, 128, 8
    $region9: #{source_adaptor_fwd.1} parent=1 // pred_fallthru
      _
    // Predicated region
    $region10: #{source_adaptor_fwd.1} parent=1 // pred_check
      _
    $region11: #{source_adaptor_fwd.1} parent=1 // pred_check_branch
      %27 = sbr.rel (0) target = $region13
    $region12: #{source_adaptor_fwd.1} parent=1 // pred_region
      _
    $region13: #{source_adaptor_fwd.1} parent=1 // pred_fallthru
      _
    // Predicated region
    $region14: #{source_adaptor_fwd.1} parent=1 // pred_check
      _
    $region15: #{source_adaptor_fwd.1} parent=1 // pred_check_branch
      %29 = sbr.rel (0) target = $region17
    $region16: #{source_adaptor_fwd.1} parent=1 // pred_region
      %s31 = ssub.s32 2048, 2048
      %32 = vsyncadd [#allocation5], %s31
      %s33 = sshll.u32 [#allocation4], 4
      %s34 = int_to_ptr.vmem [resolvable:$true] %s33
      %39 = dma.hbm_to_vmem [thread:$0]  %s3, 2048, %s34, [#allocation5], 128, 128, 8
    $region17: #{source_adaptor_fwd.1} parent=1 // pred_fallthru
      _
    // Predicated region
    $region18: #{source_adaptor_fwd.1} parent=1 // pred_check
      _
    $region19: #{source_adaptor_fwd.1} parent=1 // pred_check_branch
      %41 = sbr.rel (0) target = $region21
    $region20: #{source_adaptor_fwd.1} parent=1 // pred_region
      _
    $region21: #{source_adaptor_fwd.1} parent=1 // pred_fallthru
      _
    // Predicated region
    $region22: #{source_adaptor_fwd.1} parent=1 // pred_check
      _
    $region23: #{source_adaptor_fwd.1} parent=1 // pred_check_branch
      %43 = sbr.rel (0) target = $region25
    $region24: #{source_adaptor_fwd.1} parent=1 // pred_region
      %44 = dma.done [#allocation3], 2048
    $region25: #{source_adaptor_fwd.1} parent=1 // pred_fallthru
      _
    // Predicated region
    $region26: #{source_adaptor_fwd.1} parent=1 // pred_check
      _
    $region27: #{source_adaptor_fwd.1} parent=1 // pred_check_branch
      %46 = sbr.rel (0) target = $region29
    $region28: #{source_adaptor_fwd.1} parent=1 // pred_region
      %47 = dma.done [#allocation5], 2048
    $region29: #{source_adaptor_fwd.1} parent=1 // pred_fallthru
      _
    %v48 = vld [vmem:[%s0] sm:$0xff]
    %v49 = vld [vmem:[%s0 + $0x8] sm:$0xff]
    %v50 = vld [vmem:[#allocation2] sm:$0xff]
    %v51 = vld [vmem:[#allocation2 + $0x8] sm:$0xff]
    %v52 = vld [vmem:[#allocation2 + $0x10] sm:$0xff]
    %v53 = vld [vmem:[#allocation2 + $0x18] sm:$0xff]
    %v54 = vld [vmem:[#allocation2 + $0x20] sm:$0xff]
    %v55 = vld [vmem:[#allocation2 + $0x28] sm:$0xff]
    %v56 = vld [vmem:[#allocation2 + $0x30] sm:$0xff]
    %v57 = vld [vmem:[#allocation2 + $0x38] sm:$0xff]
    %v58 = vld [vmem:[#allocation2 + $0x40] sm:$0xff]
    %v59 = vld [vmem:[#allocation2 + $0x48] sm:$0xff]
    %v60 = vld [vmem:[#allocation2 + $0x50] sm:$0xff]
    %v61 = vld [vmem:[#allocation2 + $0x58] sm:$0xff]
    %v62 = vld [vmem:[#allocation2 + $0x60] sm:$0xff]
    %v63 = vld [vmem:[#allocation2 + $0x68] sm:$0xff]
    %v64 = vld [vmem:[#allocation2 + $0x70] sm:$0xff]
    %v65 = vld [vmem:[#allocation2 + $0x78] sm:$0xff]
    %v66 = vld [vmem:[%s2] sm:$0x1]
    %v68 = vlaneseq
    %v69 = vshrl.u32 %v68, 7
    %v70 = vsub.s32 0, %v69
    %v71 = vrot.slane %v66, %v70
    %73 = vmatprep.subr.mxu0 0.0
    %74 = vmatpush1.msra.mxu0 %v65
    %75 = vmatprep.subr.mxu0 0.0
    %76 = vmatpush1.msra.mxu0 %v64
    %77 = vmatprep.subr.mxu0 0.0
    %78 = vmatpush1.msra.mxu0 %v63
    %79 = vmatprep.subr.mxu0 0.0
    %80 = vmatpush1.msra.mxu0 %v62
    %81 = vmatprep.subr.mxu0 0.0
    %82 = vmatpush1.msra.mxu0 %v61
    %83 = vmatprep.subr.mxu0 0.0
    %84 = vmatpush1.msra.mxu0 %v60
    %85 = vmatprep.subr.mxu0 0.0
    %86 = vmatpush1.msra.mxu0 %v59
    %87 = vmatprep.subr.mxu0 0.0
    %88 = vmatpush1.msra.mxu0 %v58
    %89 = vmatprep.subr.mxu0 0.0
    %90 = vmatpush1.msra.mxu0 %v57
    %91 = vmatprep.subr.mxu0 0.0
    %92 = vmatpush1.msra.mxu0 %v56
    %93 = vmatprep.subr.mxu0 0.0
    %94 = vmatpush1.msra.mxu0 %v55
    %95 = vmatprep.subr.mxu0 0.0
    %96 = vmatpush1.msra.mxu0 %v54
    %97 = vmatprep.subr.mxu0 0.0
    %98 = vmatpush1.msra.mxu0 %v53
    %99 = vmatprep.subr.mxu0 0.0
    %100 = vmatpush1.msra.mxu0 %v52
    %101 = vmatprep.subr.mxu0 0.0
    %102 = vmatpush1.msra.mxu0 %v51
    %103 = vmatprep.subr.mxu0 0.0
    %104 = vmatpush1.msra.mxu0 %v50
    %105 = vmatprep.subr.mxu0 0.0
    %106 = vmatpush2.msra.mxu0 0.0
    %107 = vmatprep.subr.mxu0 0.0
    %108 = vmatpush2.msra.mxu0 0.0
    %109 = vmatprep.subr.mxu0 0.0
    %110 = vmatpush2.msra.mxu0 0.0
    %111 = vmatprep.subr.mxu0 0.0
    %112 = vmatpush2.msra.mxu0 0.0
    %113 = vmatprep.subr.mxu0 0.0
    %114 = vmatpush2.msra.mxu0 0.0
    %115 = vmatprep.subr.mxu0 0.0
    %116 = vmatpush2.msra.mxu0 0.0
    %117 = vmatprep.subr.mxu0 0.0
    %118 = vmatpush2.msra.mxu0 0.0
    %119 = vmatprep.subr.mxu0 0.0
    %120 = vmatpush2.msra.mxu0 0.0
    %121 = vmatprep.subr.mxu0 0.0
    %122 = vmatpush2.msra.mxu0 0.0
    %123 = vmatprep.subr.mxu0 0.0
    %124 = vmatpush2.msra.mxu0 0.0
    %125 = vmatprep.subr.mxu0 0.0
    %126 = vmatpush2.msra.mxu0 0.0
    %127 = vmatprep.subr.mxu0 0.0
    %128 = vmatpush2.msra.mxu0 0.0
    %129 = vmatprep.subr.mxu0 0.0
    %130 = vmatpush2.msra.mxu0 0.0
    %131 = vmatprep.subr.mxu0 0.0
    %132 = vmatpush2.msra.mxu0 0.0
    %133 = vmatprep.subr.mxu0 0.0
    %134 = vmatpush2.msra.mxu0 0.0
    %135 = vmatprep.subr.mxu0 0.0
    %136 = vmatpush2.msra.mxu0 0.0
    %137 = vmatprep.mubr.f32.mxu0 0.0
    %138 = vmatmul.mubr.f32.gmra.mxu0 %v48
    %v139 = vpop.f32.mrf.mxu0
    %v140 = vadd.f32 %v71, %v139
    %v141 = vpop.f32.mrf.mxu0
    %142 = vmatprep.mubr.f32.mxu0 0.0
    %143 = vmatmul.mubr.f32.gmra.mxu0 %v49
    %v144 = vpop.f32.mrf.mxu0
    %v145 = vadd.f32 %v71, %v144
    %v146 = vpop.f32.mrf.mxu0
    %147 = vdwg.mxu0
    %v148 = vmax.f32 %v140, 0.0
    %v149 = vmax.f32 %v145, 0.0
    %v150 = vld [vmem:[#allocation4] sm:$0xff]
    %v151 = vld [vmem:[#allocation4 + $0x8] sm:$0xff]
    %v152 = vld [vmem:[#allocation4 + $0x10] sm:$0xff]
    %v153 = vld [vmem:[#allocation4 + $0x18] sm:$0xff]
    %v154 = vld [vmem:[#allocation4 + $0x20] sm:$0xff]
    %v155 = vld [vmem:[#allocation4 + $0x28] sm:$0xff]
    %v156 = vld [vmem:[#allocation4 + $0x30] sm:$0xff]
    %v157 = vld [vmem:[#allocation4 + $0x38] sm:$0xff]
    %v158 = vld [vmem:[#allocation4 + $0x40] sm:$0xff]
    %v159 = vld [vmem:[#allocation4 + $0x48] sm:$0xff]
    %v160 = vld [vmem:[#allocation4 + $0x50] sm:$0xff]
    %v161 = vld [vmem:[#allocation4 + $0x58] sm:$0xff]
    %v162 = vld [vmem:[#allocation4 + $0x60] sm:$0xff]
    %v163 = vld [vmem:[#allocation4 + $0x68] sm:$0xff]
    %v164 = vld [vmem:[#allocation4 + $0x70] sm:$0xff]
    %v165 = vld [vmem:[#allocation4 + $0x78] sm:$0xff]
    %v166 = vld [vmem:[%s4] sm:$0x1]
    %v168 = vlaneseq
    %v169 = vshrl.u32 %v168, 7
    %v170 = vsub.s32 0, %v169
    %v171 = vrot.slane %v166, %v170
    %173 = vmatprep.subr.mxu0 0.0
    %174 = vmatpush1.msra.mxu0 %v165
    %175 = vmatprep.subr.mxu0 0.0
    %176 = vmatpush1.msra.mxu0 %v164
    %177 = vmatprep.subr.mxu0 0.0
    %178 = vmatpush1.msra.mxu0 %v163
    %179 = vmatprep.subr.mxu0 0.0
    %180 = vmatpush1.msra.mxu0 %v162
    %181 = vmatprep.subr.mxu0 0.0
    %182 = vmatpush1.msra.mxu0 %v161
    %183 = vmatprep.subr.mxu0 0.0
    %184 = vmatpush1.msra.mxu0 %v160
    %185 = vmatprep.subr.mxu0 0.0
    %186 = vmatpush1.msra.mxu0 %v159
    %187 = vmatprep.subr.mxu0 0.0
    %188 = vmatpush1.msra.mxu0 %v158
    %189 = vmatprep.subr.mxu0 0.0
    %190 = vmatpush1.msra.mxu0 %v157
    %191 = vmatprep.subr.mxu0 0.0
    %192 = vmatpush1.msra.mxu0 %v156
    %193 = vmatprep.subr.mxu0 0.0
    %194 = vmatpush1.msra.mxu0 %v155
    %195 = vmatprep.subr.mxu0 0.0
    %196 = vmatpush1.msra.mxu0 %v154
    %197 = vmatprep.subr.mxu0 0.0
    %198 = vmatpush1.msra.mxu0 %v153
    %199 = vmatprep.subr.mxu0 0.0
    %200 = vmatpush1.msra.mxu0 %v152
    %201 = vmatprep.subr.mxu0 0.0
    %202 = vmatpush1.msra.mxu0 %v151
    %203 = vmatprep.subr.mxu0 0.0
    %204 = vmatpush1.msra.mxu0 %v150
    %205 = vmatprep.subr.mxu0 0.0
    %206 = vmatpush2.msra.mxu0 0.0
    %207 = vmatprep.subr.mxu0 0.0
    %208 = vmatpush2.msra.mxu0 0.0
    %209 = vmatprep.subr.mxu0 0.0
    %210 = vmatpush2.msra.mxu0 0.0
    %211 = vmatprep.subr.mxu0 0.0
    %212 = vmatpush2.msra.mxu0 0.0
    %213 = vmatprep.subr.mxu0 0.0
    %214 = vmatpush2.msra.mxu0 0.0
    %215 = vmatprep.subr.mxu0 0.0
    %216 = vmatpush2.msra.mxu0 0.0
    %217 = vmatprep.subr.mxu0 0.0
    %218 = vmatpush2.msra.mxu0 0.0
    %219 = vmatprep.subr.mxu0 0.0
    %220 = vmatpush2.msra.mxu0 0.0
    %221 = vmatprep.subr.mxu0 0.0
    %222 = vmatpush2.msra.mxu0 0.0
    %223 = vmatprep.subr.mxu0 0.0
    %224 = vmatpush2.msra.mxu0 0.0
    %225 = vmatprep.subr.mxu0 0.0
    %226 = vmatpush2.msra.mxu0 0.0
    %227 = vmatprep.subr.mxu0 0.0
    %228 = vmatpush2.msra.mxu0 0.0
    %229 = vmatprep.subr.mxu0 0.0
    %230 = vmatpush2.msra.mxu0 0.0
    %231 = vmatprep.subr.mxu0 0.0
    %232 = vmatpush2.msra.mxu0 0.0
    %233 = vmatprep.subr.mxu0 0.0
    %234 = vmatpush2.msra.mxu0 0.0
    %235 = vmatprep.subr.mxu0 0.0
    %236 = vmatpush2.msra.mxu0 0.0
    %237 = vmatprep.mubr.f32.mxu0 0.0
    %238 = vmatmul.mubr.f32.gmra.mxu0 %v148
    %v239 = vpop.f32.mrf.mxu0
    %v240 = vadd.f32 %v171, %v239
    %v241 = vpop.f32.mrf.mxu0
    %242 = vmatprep.mubr.f32.mxu0 0.0
    %243 = vmatmul.mubr.f32.gmra.mxu0 %v149
    %v244 = vpop.f32.mrf.mxu0
    %v245 = vadd.f32 %v171, %v244
    %v246 = vpop.f32.mrf.mxu0
    %247 = vdwg.mxu0
    %v248 = vadd.f32 %v48, %v240
    %v249 = vadd.f32 %v49, %v245
    %250 = vst [vmem:[%s5] sm:$0xff] %v248
    %251 = vst [vmem:[%s5 + $0x8] sm:$0xff] %v249
    // Predicated region
    $region30: #{source_adaptor_fwd.1} parent=1 // pred_check
      _
    $region31: #{source_adaptor_fwd.1} parent=1 // pred_check_branch
      %253 = sbr.rel (0) target = $region33
    $region32: #{source_adaptor_fwd.1} parent=1 // pred_region
      _
    $region33: #{source_adaptor_fwd.1} parent=1 // pred_fallthru
      _
    // Predicated region
    $region34: #{source_adaptor_fwd.1} parent=1 // pred_check
      _
    $region35: #{source_adaptor_fwd.1} parent=1 // pred_check_branch
      %255 = sbr.rel (0) target = $region37
    $region36: #{source_adaptor_fwd.1} parent=1 // pred_region
      _
    $region37: #{source_adaptor_fwd.1} parent=1 // pred_fallthru
      _
    %256 = vsyncpa [#allocation3], 1
    %257 = vsyncpa [#allocation5], 1

</llo_original>
